<compile_context>
chip_gen: v7x
topology: tpu7x:2x2x1
jax: 0.10.0
libtpu: 0.0.40
codegen_flags: <defaults>
</compile_context>

<pallas_src>
import functools

import jax
import jax.numpy as jnp
from jax.experimental import pallas as pl
from jax.experimental.pallas import tpu as pltpu


def _round_up(n, m):
    return ((n + m - 1) // m) * m


def _sigmoid(x):
    # Same formula used in kernel and reference so they match bit-for-bit-ish.
    return 1.0 / (1.0 + jnp.exp(-x))


# ----------------------------------------------------------------------------
# Kernel A: fused BN1 + conv1x1 + LeakyReLU + BN2 + LSTM1 input projection.
# ----------------------------------------------------------------------------
def frontend_kernel(x_ref, w1_ref, b1_ref, w2_ref, b2_ref, o_ref):
    # [tm, E] @ [E, SF] + [1, SF]   (f32 accumulation on the MXU)
    h = jnp.dot(x_ref[...], w1_ref[...],
                preferred_element_type=jnp.float32) + b1_ref[...]
    # LeakyReLU, PyTorch default negative_slope = 0.01
    h = jnp.where(h > 0, h, 0.01 * h)
    # [tm, SF] @ [SF, 4H] + [1, 4H]  -> 256-lane (lane-dense) output rows
    out = jnp.dot(h.astype(w2_ref.dtype), w2_ref[...],
                  preferred_element_type=jnp.float32) + b2_ref[...]
    o_ref[...] = out.astype(o_ref.dtype)


def frontend(x_rows, w1, b1, w2, b2, *, tm_max=256, use_bf16=False):
    """x_rows: [N, E] -> [N, 4H] LSTM-1 gate pre-activations (minus h-recurrence)."""
    N, E = x_rows.shape
    G = w2.shape[1]

    # Large row tile (perf feedback): multiple of 8, capped by padded row count.
    tm = min(tm_max, _round_up(N, 8))
    n_pad = _round_up(N, tm)
    if n_pad != N:
        x_rows = jnp.pad(x_rows, ((0, n_pad - N), (0, 0)))

    if use_bf16:
        # Halves DMA bytes / doubles MXU rate; accumulation stays f32 and the
        # biases are added in f32.  Off by default to keep the built-in
        # correctness check tight.
        x_rows = x_rows.astype(jnp.bfloat16)
        w1 = w1.astype(jnp.bfloat16)
        w2 = w2.astype(jnp.bfloat16)

    b1_2d = b1.reshape(1, -1).astype(jnp.float32)
    b2_2d = b2.reshape(1, -1).astype(jnp.float32)

    out = pl.pallas_call(
        frontend_kernel,
        out_shape=jax.ShapeDtypeStruct((n_pad, G), jnp.float32),
        grid_spec=pltpu.PrefetchScalarGridSpec(
            num_scalar_prefetch=0,
            grid=(n_pad // tm,),
            in_specs=[
                pl.BlockSpec((tm, E), lambda i: (i, 0)),          # x row tile
                pl.BlockSpec((E, w1.shape[1]), lambda i: (0, 0)),  # folded conv W
                pl.BlockSpec((1, w1.shape[1]), lambda i: (0, 0)),  # folded conv b
                pl.BlockSpec((w2.shape[0], G), lambda i: (0, 0)),  # folded ih1 W
                pl.BlockSpec((1, G), lambda i: (0, 0)),            # folded ih1 b
            ],
            out_specs=pl.BlockSpec((tm, G), lambda i: (i, 0)),
        ),
        compiler_params=pltpu.CompilerParams(
            dimension_semantics=("parallel",)),
    )(x_rows, w1, b1_2d, w2, b2_2d)
    return out[:N]


# ----------------------------------------------------------------------------
# Kernel B: two stacked LSTM layers, grid over time, state in VMEM scratch.
# ----------------------------------------------------------------------------
def lstm_kernel(xp_ref, whh1_ref, wih2_ref, whh2_ref, b2_ref, o_ref,
                h1_ref, c1_ref, h2_ref, c2_ref):
    t = pl.program_id(0)

    @pl.when(t == 0)
    def _():
        h1_ref[...] = jnp.zeros_like(h1_ref)
        c1_ref[...] = jnp.zeros_like(c1_ref)
        h2_ref[...] = jnp.zeros_like(h2_ref)
        c2_ref[...] = jnp.zeros_like(c2_ref)

    H = h1_ref.shape[-1]

    # ---- layer 1: input projection (and biases) already folded into xp ----
    g1 = xp_ref[0] + jnp.dot(h1_ref[...], whh1_ref[...],
                             preferred_element_type=jnp.float32)
    i1 = _sigmoid(g1[:, 0 * H:1 * H])
    f1 = _sigmoid(g1[:, 1 * H:2 * H])
    gc1 = jnp.tanh(g1[:, 2 * H:3 * H])
    o1 = _sigmoid(g1[:, 3 * H:4 * H])
    c1 = f1 * c1_ref[...] + i1 * gc1
    h1 = o1 * jnp.tanh(c1)
    c1_ref[...] = c1
    h1_ref[...] = h1

    # ---- layer 2 ----
    g2 = (jnp.dot(h1, wih2_ref[...], preferred_element_type=jnp.float32)
          + jnp.dot(h2_ref[...], whh2_ref[...], preferred_element_type=jnp.float32)
          + b2_ref[...])
    i2 = _sigmoid(g2[:, 0 * H:1 * H])
    f2 = _sigmoid(g2[:, 1 * H:2 * H])
    gc2 = jnp.tanh(g2[:, 2 * H:3 * H])
    o2 = _sigmoid(g2[:, 3 * H:4 * H])
    c2 = f2 * c2_ref[...] + i2 * gc2
    h2 = o2 * jnp.tanh(c2)
    c2_ref[...] = c2
    h2_ref[...] = h2

    o_ref[0] = h2.astype(o_ref.dtype)


def lstm_stack(xp_tbg, whh1T, wih2T, whh2T, b2):
    """xp_tbg: [T, B, 4H] precomputed layer-1 gate inputs -> [T, B, H] outputs."""
    T, B, G = xp_tbg.shape
    H = G // 4
    b2_2d = b2.reshape(1, G).astype(jnp.float32)

    return pl.pallas_call(
        lstm_kernel,
        out_shape=jax.ShapeDtypeStruct((T, B, H), jnp.float32),
        grid_spec=pltpu.PrefetchScalarGridSpec(
            num_scalar_prefetch=0,
            grid=(T,),
            in_specs=[
                pl.BlockSpec((1, B, G), lambda t: (t, 0, 0)),  # xp at time t
                pl.BlockSpec((H, G), lambda t: (0, 0)),        # W_hh1^T (resident)
                pl.BlockSpec((H, G), lambda t: (0, 0)),        # W_ih2^T (resident)
                pl.BlockSpec((H, G), lambda t: (0, 0)),        # W_hh2^T (resident)
                pl.BlockSpec((1, G), lambda t: (0, 0)),        # layer-2 bias
            ],
            out_specs=pl.BlockSpec((1, B, H), lambda t: (t, 0, 0)),
            scratch_shapes=[pltpu.VMEM((B, H), jnp.float32)] * 4,  # h1, c1, h2, c2
        ),
        compiler_params=pltpu.CompilerParams(
            dimension_semantics=("arbitrary",)),  # true recurrence over time
    )(xp_tbg, whh1T, wih2T, whh2T, b2_2d)


# ----------------------------------------------------------------------------
# Full forward
# ----------------------------------------------------------------------------
def eeg_lstm_forward(x, params, *, tm_max=256, use_bf16=False):
    """x: [B, T, speech_dim] -> [B, T, units_lstm]."""
    B, T, E = x.shape
    G = params["lstm1_w_ih"].shape[0]      # 4 * units_lstm
    H = G // 4
    eps = 1e-5

    # Fold BN1 (eval) into the 1x1 conv:  conv(BN1(x)) = x @ W1 + b1
    s1 = params["bn1_gamma"] / jnp.sqrt(params["bn1_var"] + eps)
    t1 = params["bn1_beta"] - params["bn1_mean"] * s1
    WcT = params["conv_w"].T                                  # [E, SF]
    W1 = s1[:, None] * WcT
    b1 = t1 @ WcT + params["conv_b"]

    # Fold BN2 (eval) + both LSTM-1 biases into the LSTM-1 input projection.
    s2 = params["bn2_gamma"] / jnp.sqrt(params["bn2_var"] + eps)
    t2 = params["bn2_beta"] - params["bn2_mean"] * s2
    Wih1T = params["lstm1_w_ih"].T                            # [SF, 4H]
    W2 = s2[:, None] * Wih1T
    b2 = t2 @ Wih1T + params["lstm1_b_ih"] + params["lstm1_b_hh"]

    # Time-major row layout so the recurrent kernel reads [T, B, 4H] blocks
    # without a transpose of the (large) frontend output.
    x_rows = jnp.transpose(x, (1, 0, 2)).reshape(T * B, E)
    xp = frontend(x_rows, W1, b1, W2, b2, tm_max=tm_max, use_bf16=use_bf16)
    xp = xp.reshape(T, B, G)

    out_tbh = lstm_stack(
        xp,
        params["lstm1_w_hh"].T,                               # [H, 4H]
        params["lstm2_w_ih"].T,                               # [H, 4H]
        params["lstm2_w_hh"].T,                               # [H, 4H]
        params["lstm2_b_ih"] + params["lstm2_b_hh"],          # [4H]
    )
    return jnp.transpose(out_tbh, (1, 0, 2))                  # [B, T, H]


# ----------------------------------------------------------------------------
# Pure-JAX reference (eval-mode BN, PyTorch LSTM gate order i, f, g, o)
# ----------------------------------------------------------------------------
def reference(x, params):
    eps = 1e-5
    xn = ((x - params["bn1_mean"]) / jnp.sqrt(params["bn1_var"] + eps)
          * params["bn1_gamma"] + params["bn1_beta"])
    h = xn @ params["conv_w"].T + params["conv_b"]
    h = jnp.where(h > 0, h, 0.01 * h)
    h = ((h - params["bn2_mean"]) / jnp.sqrt(params["bn2_var"] + eps)
         * params["bn2_gamma"] + params["bn2_beta"])

    def lstm(seq, w_ih, w_hh, b_ih, b_hh):
        Bb, Tt, _ = seq.shape
        Hh = w_hh.shape[1]

        def step(carry, xt):
            hp, cp = carry
            g = xt @ w_ih.T + b_ih + hp @ w_hh.T + b_hh
            i = _sigmoid(g[:, :Hh])
            f = _sigmoid(g[:, Hh:2 * Hh])
            gc = jnp.tanh(g[:, 2 * Hh:3 * Hh])
            o = _sigmoid(g[:, 3 * Hh:])
            c = f * cp + i * gc
            hh = o * jnp.tanh(c)
            return (hh, c), hh

        init = (jnp.zeros((Bb, Hh), jnp.float32), jnp.zeros((Bb, Hh), jnp.float32))
        _, ys = jax.lax.scan(step, init, jnp.transpose(seq, (1, 0, 2)))
        return jnp.transpose(ys, (1, 0, 2))

    h = lstm(h, params["lstm1_w_ih"], params["lstm1_w_hh"],
             params["lstm1_b_ih"], params["lstm1_b_hh"])
    h = lstm(h, params["lstm2_w_ih"], params["lstm2_w_hh"],
             params["lstm2_b_ih"], params["lstm2_b_hh"])
    return h


if __name__ == "__main__":
    # Small shapes consistent with the module defaults:
    #   speech_dim=64, spatial_filters=32, units_lstm=64; batch=2, seq_len=8.
    B, T, E, SF, H = 2, 8, 64, 32, 64

    ks = jax.random.split(jax.random.PRNGKey(0), 24)

    def unif(k, shape, bound):
        return jax.random.uniform(k, shape, jnp.float32, -bound, bound)

    params = {
        "bn1_gamma": jax.random.uniform(ks[0], (E,), jnp.float32, 0.5, 1.5),
        "bn1_beta": 0.1 * jax.random.normal(ks[1], (E,), jnp.float32),
        "bn1_mean": 0.1 * jax.random.normal(ks[2], (E,), jnp.float32),
        "bn1_var": jax.random.uniform(ks[3], (E,), jnp.float32, 0.5, 1.5),
        "conv_w": unif(ks[4], (SF, E), 1.0 / E ** 0.5),
        "conv_b": unif(ks[5], (SF,), 1.0 / E ** 0.5),
        "bn2_gamma": jax.random.uniform(ks[6], (SF,), jnp.float32, 0.5, 1.5),
        "bn2_beta": 0.1 * jax.random.normal(ks[7], (SF,), jnp.float32),
        "bn2_mean": 0.1 * jax.random.normal(ks[8], (SF,), jnp.float32),
        "bn2_var": jax.random.uniform(ks[9], (SF,), jnp.float32, 0.5, 1.5),
        "lstm1_w_ih": unif(ks[10], (4 * H, SF), 1.0 / H ** 0.5),
        "lstm1_w_hh": unif(ks[11], (4 * H, H), 1.0 / H ** 0.5),
        "lstm1_b_ih": unif(ks[12], (4 * H,), 1.0 / H ** 0.5),
        "lstm1_b_hh": unif(ks[13], (4 * H,), 1.0 / H ** 0.5),
        "lstm2_w_ih": unif(ks[14], (4 * H, H), 1.0 / H ** 0.5),
        "lstm2_w_hh": unif(ks[15], (4 * H, H), 1.0 / H ** 0.5),
        "lstm2_b_ih": unif(ks[16], (4 * H,), 1.0 / H ** 0.5),
        "lstm2_b_hh": unif(ks[17], (4 * H,), 1.0 / H ** 0.5),
    }
    x = jax.random.normal(ks[18], (B, T, E), jnp.float32)

    out = eeg_lstm_forward(x, params)
    out = jax.block_until_ready(out)

    ref = reference(x, params)
    assert out.shape == (B, T, H), out.shape
    err = float(jnp.max(jnp.abs(out - ref)))
    # Tolerance accounts for default (reduced-precision) MXU f32 matmul passes
    # differing slightly between the Pallas kernels and the XLA reference.
    assert jnp.allclose(out, ref, atol=1e-2, rtol=1e-2), f"mismatch, max abs err {err}"

    print("KERNEL_OK")
</pallas_src>

<mosaic_0001>
module attributes {stable_mosaic.version = 11 : i64} {
  func.func @frontend_kernel(%arg0: i32, %arg1: memref<16x64xf32, #tpu.memory_space<vmem>>, %arg2: memref<64x32xf32, #tpu.memory_space<vmem>>, %arg3: memref<1x32xf32, #tpu.memory_space<vmem>>, %arg4: memref<32x256xf32, #tpu.memory_space<vmem>>, %arg5: memref<1x256xf32, #tpu.memory_space<vmem>>, %arg6: memref<16x256xf32, #tpu.memory_space<vmem>>) attributes {dimension_semantics = [#tpu.dimension_semantics<parallel>], iteration_bounds = array<i64: 1>, scalar_prefetch = 0 : i64, scratch_operands = 0 : i64, tpu.core_type = #tpu.core_type<tc>, window_params = [{transform_indices = @transform_0, window_bounds = array<i64: 16, 64>}, {pipeline_mode = #tpu.pipeline_mode<synchronous>, transform_indices = @transform_1, window_bounds = array<i64: 64, 32>}, {pipeline_mode = #tpu.pipeline_mode<synchronous>, transform_indices = @transform_2, window_bounds = array<i64: 1, 32>}, {pipeline_mode = #tpu.pipeline_mode<synchronous>, transform_indices = @transform_3, window_bounds = array<i64: 32, 256>}, {pipeline_mode = #tpu.pipeline_mode<synchronous>, transform_indices = @transform_4, window_bounds = array<i64: 1, 256>}, {transform_indices = @transform_5, window_bounds = array<i64: 16, 256>}]} {
    %c0 = arith.constant 0 : index
    %c0_0 = arith.constant 0 : index
    %0 = vector.load %arg1[%c0, %c0_0] : memref<16x64xf32, #tpu.memory_space<vmem>>, vector<16x64xf32>
    %c0_1 = arith.constant 0 : index
    %c0_2 = arith.constant 0 : index
    %1 = vector.load %arg2[%c0_1, %c0_2] : memref<64x32xf32, #tpu.memory_space<vmem>>, vector<64x32xf32>
    %cst = arith.constant dense<0.000000e+00> : vector<16x32xf32>
    %2 = tpu.matmul %0, %1, %cst {dimension_numbers = #tpu.dot_dimension_numbers<[1], [0], [0], [1], [0, 0, 1, 1], [], []>} : vector<16x64xf32>, vector<64x32xf32>, vector<16x32xf32> -> vector<16x32xf32>
    %c0_3 = arith.constant 0 : index
    %c0_4 = arith.constant 0 : index
    %3 = vector.load %arg3[%c0_3, %c0_4] : memref<1x32xf32, #tpu.memory_space<vmem>>, vector<1x32xf32>
    %4 = vector.broadcast %3 : vector<1x32xf32> to vector<16x32xf32>
    %5 = arith.addf %2, %4 : vector<16x32xf32>
    %cst_5 = arith.constant 0.000000e+00 : f32
    %6 = vector.broadcast %cst_5 : f32 to vector<16x32xf32>
    %7 = arith.cmpf ogt, %5, %6 : vector<16x32xf32>
    %cst_6 = arith.constant 0.00999999977 : f32
    %8 = vector.broadcast %cst_6 : f32 to vector<16x32xf32>
    %9 = arith.mulf %8, %5 : vector<16x32xf32>
    %10 = arith.select %7, %5, %9 : vector<16x32xi1>, vector<16x32xf32>
    %c0_7 = arith.constant 0 : index
    %c0_8 = arith.constant 0 : index
    %11 = vector.load %arg4[%c0_7, %c0_8] : memref<32x256xf32, #tpu.memory_space<vmem>>, vector<32x256xf32>
    %cst_9 = arith.constant dense<0.000000e+00> : vector<16x256xf32>
    %12 = tpu.matmul %10, %11, %cst_9 {dimension_numbers = #tpu.dot_dimension_numbers<[1], [0], [0], [1], [0, 0, 1, 1], [], []>} : vector<16x32xf32>, vector<32x256xf32>, vector<16x256xf32> -> vector<16x256xf32>
    %c0_10 = arith.constant 0 : index
    %c0_11 = arith.constant 0 : index
    %13 = vector.load %arg5[%c0_10, %c0_11] : memref<1x256xf32, #tpu.memory_space<vmem>>, vector<1x256xf32>
    %14 = vector.broadcast %13 : vector<1x256xf32> to vector<16x256xf32>
    %15 = arith.addf %12, %14 : vector<16x256xf32>
    %c0_12 = arith.constant 0 : index
    %c0_13 = arith.constant 0 : index
    %16 = vector.load %arg6[%c0_12, %c0_13] : memref<16x256xf32, #tpu.memory_space<vmem>>, vector<16x256xf32>
    tpu.vector_store %arg6[%c0_12, %c0_13], %15 {strides = array<i32>} : memref<16x256xf32, #tpu.memory_space<vmem>>, vector<16x256xf32>,
    return
  }
  func.func @transform_0(%arg0: i32) -> (i32, i32) {
    %c0_i32 = arith.constant 0 : i32
    %c0_i32_0 = arith.constant 0 : i32
    return %arg0, %c0_i32 : i32, i32
  }
  func.func @transform_1(%arg0: i32) -> (i32, i32) {
    %c0_i32 = arith.constant 0 : i32
    %c0_i32_0 = arith.constant 0 : i32
    %c0_i32_1 = arith.constant 0 : i32
    return %c0_i32, %c0_i32_0 : i32, i32
  }
  func.func @transform_2(%arg0: i32) -> (i32, i32) {
    %c0_i32 = arith.constant 0 : i32
    %c0_i32_0 = arith.constant 0 : i32
    %c0_i32_1 = arith.constant 0 : i32
    return %c0_i32, %c0_i32_0 : i32, i32
  }
  func.func @transform_3(%arg0: i32) -> (i32, i32) {
    %c0_i32 = arith.constant 0 : i32
    %c0_i32_0 = arith.constant 0 : i32
    %c0_i32_1 = arith.constant 0 : i32
    return %c0_i32, %c0_i32_0 : i32, i32
  }
  func.func @transform_4(%arg0: i32) -> (i32, i32) {
    %c0_i32 = arith.constant 0 : i32
    %c0_i32_0 = arith.constant 0 : i32
    %c0_i32_1 = arith.constant 0 : i32
    return %c0_i32, %c0_i32_0 : i32, i32
  }
  func.func @transform_5(%arg0: i32) -> (i32, i32) {
    %c0_i32 = arith.constant 0 : i32
    %c0_i32_0 = arith.constant 0 : i32
    return %arg0, %c0_i32 : i32, i32
  }
}

</mosaic_0001>

<llo_original>
// kernel: tpu_custom_call.1
$region0: #{tpu_custom_call.1}
  #allocation0 [shape = 'u32[]', space=smem, size = 0x4, offset = 0x4, fixed_abs, tag = 'smem constant byte address 0x4 - core index']
  #allocation1 [shape = 'u32[144,128]{1,0:T(1,128)}', space=vmem, size = 0x12000, scoped, tag = 'internal scratch']
  %s0 = inlined_call_operand.vmem [shape: f32[16,64], index: 0, kind: input, shape index: {}]
  %s1 = inlined_call_operand.vmem [shape: f32[64,32], index: 1, kind: input, shape index: {}]
  %s2 = inlined_call_operand.vmem [shape: f32[1,32], index: 2, kind: input, shape index: {}]
  %s3 = inlined_call_operand.vmem [shape: f32[32,256], index: 3, kind: input, shape index: {}]
  %s4 = inlined_call_operand.vmem [shape: f32[1,256], index: 4, kind: input, shape index: {}]
  %s5 = inlined_call_operand.hbm [shape: f32[16,256], index: 5, kind: output, shape index: {}]
  %s6 = sld [smem:[#allocation0]]
  $region30: #{tpu_custom_call.1} parent=0
    _
  %s8 = ssub.s32 1, %s6
  %s9 = scalar_select 0, %s8, %s6
  $region1: #{tpu_custom_call.1} parent=0
    #allocation2 [shape = 'u8[16384]{0}', space=vmem, size = 0x4000, scoped, tag = 'output window, operand 0, single buffered']
    #allocation3 [shape = 's32[1]{0}', space=sflag, size = 0x4, scoped, tag = 'scoped memory for tpu_custom_call.1']
    %10 = vsyncpa [#allocation3], 0
    // Predicated region
    $region2: #{tpu_custom_call.1} parent=1 // pred_check
      _
    $region3: #{tpu_custom_call.1} parent=1 // pred_check_branch
      %12 = sbr.rel (0) target = $region5
    $region4: #{tpu_custom_call.1} parent=1 // pred_region
      _
    $region5: #{tpu_custom_call.1} parent=1 // pred_fallthru
      _
    // Predicated region
    $region6: #{tpu_custom_call.1} parent=1 // pred_check
      _
    $region7: #{tpu_custom_call.1} parent=1 // pred_check_branch
      %14 = sbr.rel (0) target = $region9
    $region8: #{tpu_custom_call.1} parent=1 // pred_region
      _
    $region9: #{tpu_custom_call.1} parent=1 // pred_fallthru
      _
    // Predicated region
    $region10: #{tpu_custom_call.1} parent=1 // pred_check
      _
    $region11: #{tpu_custom_call.1} parent=1 // pred_check_branch
      %16 = sbr.rel (0) target = $region13
    $region12: #{tpu_custom_call.1} parent=1 // pred_region
      _
    $region13: #{tpu_custom_call.1} parent=1 // pred_fallthru
      _
    // Predicated region
    $region14: #{tpu_custom_call.1} parent=1 // pred_check
      _
    $region15: #{tpu_custom_call.1} parent=1 // pred_check_branch
      %18 = sbr.rel (0) target = $region17
    $region16: #{tpu_custom_call.1} parent=1 // pred_region
      _
    $region17: #{tpu_custom_call.1} parent=1 // pred_fallthru
      _
    // Predicated region
    $region18: #{tpu_custom_call.1} parent=1 // pred_check
      _
    $region19: #{tpu_custom_call.1} parent=1 // pred_check_branch
      %20 = sbr.rel (0) target = $region21
    $region20: #{tpu_custom_call.1} parent=1 // pred_region
      _
    $region21: #{tpu_custom_call.1} parent=1 // pred_fallthru
      _
    %v21 = vld [vmem:[%s0] sm:$0xff]
    %v22 = vld [vmem:[%s0 + $0x8] sm:$0xff]
    %v23 = vld [vmem:[%s1] sm:$0xff]
    %v24 = vld [vmem:[%s1 + $0x8] sm:$0xff]
    %v25 = vld [vmem:[%s1 + $0x10] sm:$0xff]
    %v26 = vld [vmem:[%s1 + $0x18] sm:$0xff]
    %v27 = vld [vmem:[%s1 + $0x20] sm:$0xff]
    %v28 = vld [vmem:[%s1 + $0x28] sm:$0xff]
    %v29 = vld [vmem:[%s1 + $0x30] sm:$0xff]
    %v30 = vld [vmem:[%s1 + $0x38] sm:$0xff]
    %v31 = vld [vmem:[%s2] sm:$0x1]
    %v33 = vlaneseq
    %v34 = vshrl.u32 %v33, 7
    %v35 = vsub.s32 0, %v34
    %v36 = vrot.slane %v31, %v35
    %vm38 = vcmask 523264
    %v40 = vsel %vm38, %v21, 0
    %v43 = vsel %vm38, %v22, 0
    %45 = vmatprep.subr.mxu0 0.0
    %46 = vmatpush1.msra.mxu0 %v23
    %47 = vmatprep.subr.mxu0 0.0
    %48 = vmatpush1.msra.mxu0 %v24
    %49 = vmatprep.subr.mxu0 0.0
    %50 = vmatpush1.msra.mxu0 %v25
    %51 = vmatprep.subr.mxu0 0.0
    %52 = vmatpush1.msra.mxu0 %v26
    %53 = vmatprep.subr.mxu0 0.0
    %54 = vmatpush1.msra.mxu0 %v27
    %55 = vmatprep.subr.mxu0 0.0
    %56 = vmatpush1.msra.mxu0 %v28
    %57 = vmatprep.subr.mxu0 0.0
    %58 = vmatpush1.msra.mxu0 %v29
    %59 = vmatprep.subr.mxu0 0.0
    %60 = vmatpush1.msra.mxu0 %v30
    %61 = vmatprep.subr.mxu0 0.0
    %62 = vmatpush1.msra.mxu0 0.0
    %63 = vmatprep.subr.mxu0 0.0
    %64 = vmatpush1.msra.mxu0 0.0
    %65 = vmatprep.subr.mxu0 0.0
    %66 = vmatpush1.msra.mxu0 0.0
    %67 = vmatprep.subr.mxu0 0.0
    %68 = vmatpush1.msra.mxu0 0.0
    %69 = vmatprep.subr.mxu0 0.0
    %70 = vmatpush1.msra.mxu0 0.0
    %71 = vmatprep.subr.mxu0 0.0
    %72 = vmatpush1.msra.mxu0 0.0
    %73 = vmatprep.subr.mxu0 0.0
    %74 = vmatpush1.msra.mxu0 0.0
    %75 = vmatprep.subr.mxu0 0.0
    %76 = vmatpush1.msra.mxu0 0.0
    %77 = vmatprep.subr.mxu0 0.0
    %78 = vmatpush1.msra.mxu0 0.0
    %79 = vmatprep.subr.mxu0 0.0
    %80 = vmatpush1.msra.mxu0 0.0
    %81 = vmatprep.subr.mxu0 0.0
    %82 = vmatpush1.msra.mxu0 0.0
    %83 = vmatprep.subr.mxu0 0.0
    %84 = vmatpush1.msra.mxu0 0.0
    %85 = vmatprep.subr.mxu0 0.0
    %86 = vmatpush1.msra.mxu0 0.0
    %87 = vmatprep.subr.mxu0 0.0
    %88 = vmatpush1.msra.mxu0 0.0
    %89 = vmatprep.subr.mxu0 0.0
    %90 = vmatpush1.msra.mxu0 0.0
    %91 = vmatprep.subr.mxu0 0.0
    %92 = vmatpush1.msra.mxu0 0.0
    %93 = vmatprep.subr.mxu0 0.0
    %94 = vmatpush1.msra.mxu0 0.0
    %95 = vmatprep.subr.mxu0 0.0
    %96 = vmatpush1.msra.mxu0 0.0
    %97 = vmatprep.subr.mxu0 0.0
    %98 = vmatpush1.msra.mxu0 0.0
    %99 = vmatprep.subr.mxu0 0.0
    %100 = vmatpush1.msra.mxu0 0.0
    %101 = vmatprep.subr.mxu0 0.0
    %102 = vmatpush1.msra.mxu0 0.0
    %103 = vmatprep.subr.mxu0 0.0
    %104 = vmatpush1.msra.mxu0 0.0
    %105 = vmatprep.subr.mxu0 0.0
    %106 = vmatpush1.msra.mxu0 0.0
    %107 = vmatprep.subr.mxu0 0.0
    %108 = vmatpush1.msra.mxu0 0.0
    %109 = vmatprep.mubr.f32.mxu0 0.0
    %110 = vmatmul.mubr.f32.gmra.mrb[0].mxu0 %v40
    %v111 = vpop.f32.mrb[0].mxu0
    %v112 = vadd.f32 %v36, %v111
    %v113 = vpop.f32.mrb[0].mxu0
    %114 = vmatprep.mubr.f32.mxu0 0.0
    %115 = vmatmul.mubr.f32.gmra.mrb[0].mxu0 %v43
    %v116 = vpop.f32.mrb[0].mxu0
    %v117 = vadd.f32 %v36, %v116
    %v118 = vpop.f32.mrb[0].mxu0
    %119 = vdwg.mxu0
    %vm120 = vcmp.gt.f32.partialorder %v112, 0.0
    %vm121 = vcmp.gt.f32.partialorder %v117, 0.0
    %v122 = vmul.f32 %v112, 0.01
    %v123 = vmul.f32 %v117, 0.01
    %v124 = vsel %vm120, %v112, %v122
    %v125 = vsel %vm121, %v117, %v123
    %v126 = vld [vmem:[%s3] sm:$0xff]
    %v127 = vld [vmem:[%s3 + $0x8] sm:$0xff]
    %v128 = vld [vmem:[%s3 + $0x10] sm:$0xff]
    %v129 = vld [vmem:[%s3 + $0x18] sm:$0xff]
    %v130 = vld [vmem:[%s3 + $0x20] sm:$0xff]
    %v131 = vld [vmem:[%s3 + $0x28] sm:$0xff]
    %v132 = vld [vmem:[%s3 + $0x30] sm:$0xff]
    %v133 = vld [vmem:[%s3 + $0x38] sm:$0xff]
    %v134 = vld [vmem:[%s4] sm:$0x3]
    %v136 = vlaneseq
    %v137 = vshrl.u32 %v136, 7
    %v138 = vsub.s32 0, %v137
    %v139 = vrot.slane %v134, %v138
    %v140 = vlaneseq
    %v141 = vshrl.u32 %v140, 7
    %v142 = vsub.s32 1, %v141
    %v143 = vrot.slane %v134, %v142
    %vm146 = vcmask 261120
    %v148 = vsel %vm146, %v124, 0
    %v151 = vsel %vm146, %v125, 0
    %153 = vmatprep.subr.mxu0 %v127
    %154 = vmatpush1.msra.mxu0 %v126
    %155 = vmatprep.subr.mxu0 %v129
    %156 = vmatpush1.msra.mxu0 %v128
    %157 = vmatprep.subr.mxu0 %v131
    %158 = vmatpush1.msra.mxu0 %v130
    %159 = vmatprep.subr.mxu0 %v133
    %160 = vmatpush1.msra.mxu0 %v132
    %161 = vmatprep.subr.mxu0 0.0
    %162 = vmatpush1.msra.mxu0 0.0
    %163 = vmatprep.subr.mxu0 0.0
    %164 = vmatpush1.msra.mxu0 0.0
    %165 = vmatprep.subr.mxu0 0.0
    %166 = vmatpush1.msra.mxu0 0.0
    %167 = vmatprep.subr.mxu0 0.0
    %168 = vmatpush1.msra.mxu0 0.0
    %169 = vmatprep.subr.mxu0 0.0
    %170 = vmatpush1.msra.mxu0 0.0
    %171 = vmatprep.subr.mxu0 0.0
    %172 = vmatpush1.msra.mxu0 0.0
    %173 = vmatprep.subr.mxu0 0.0
    %174 = vmatpush1.msra.mxu0 0.0
    %175 = vmatprep.subr.mxu0 0.0
    %176 = vmatpush1.msra.mxu0 0.0
    %177 = vmatprep.subr.mxu0 0.0
    %178 = vmatpush1.msra.mxu0 0.0
    %179 = vmatprep.subr.mxu0 0.0
    %180 = vmatpush1.msra.mxu0 0.0
    %181 = vmatprep.subr.mxu0 0.0
    %182 = vmatpush1.msra.mxu0 0.0
    %183 = vmatprep.subr.mxu0 0.0
    %184 = vmatpush1.msra.mxu0 0.0
    %185 = vmatprep.subr.mxu0 0.0
    %186 = vmatpush1.msra.mxu0 0.0
    %187 = vmatprep.subr.mxu0 0.0
    %188 = vmatpush1.msra.mxu0 0.0
    %189 = vmatprep.subr.mxu0 0.0
    %190 = vmatpush1.msra.mxu0 0.0
    %191 = vmatprep.subr.mxu0 0.0
    %192 = vmatpush1.msra.mxu0 0.0
    %193 = vmatprep.subr.mxu0 0.0
    %194 = vmatpush1.msra.mxu0 0.0
    %195 = vmatprep.subr.mxu0 0.0
    %196 = vmatpush1.msra.mxu0 0.0
    %197 = vmatprep.subr.mxu0 0.0
    %198 = vmatpush1.msra.mxu0 0.0
    %199 = vmatprep.subr.mxu0 0.0
    %200 = vmatpush1.msra.mxu0 0.0
    %201 = vmatprep.subr.mxu0 0.0
    %202 = vmatpush1.msra.mxu0 0.0
    %203 = vmatprep.subr.mxu0 0.0
    %204 = vmatpush1.msra.mxu0 0.0
    %205 = vmatprep.subr.mxu0 0.0
    %206 = vmatpush1.msra.mxu0 0.0
    %207 = vmatprep.subr.mxu0 0.0
    %208 = vmatpush1.msra.mxu0 0.0
    %209 = vmatprep.subr.mxu0 0.0
    %210 = vmatpush1.msra.mxu0 0.0
    %211 = vmatprep.subr.mxu0 0.0
    %212 = vmatpush1.msra.mxu0 0.0
    %213 = vmatprep.subr.mxu0 0.0
    %214 = vmatpush1.msra.mxu0 0.0
    %215 = vmatprep.subr.mxu0 0.0
    %216 = vmatpush1.msra.mxu0 0.0
    %217 = vmatprep.mubr.f32.mxu0 0.0
    %218 = vmatmul.mubr.f32.gmra.mrb[0].mxu0 %v148
    %v219 = vpop.f32.mrb[0].mxu0
    %v220 = vadd.f32 %v139, %v219
    %v221 = vpop.f32.mrb[0].mxu0
    %v222 = vadd.f32 %v143, %v221
    %223 = vmatprep.mubr.f32.mxu0 0.0
    %224 = vmatmul.mubr.f32.gmra.mrb[0].mxu0 %v151
    %v225 = vpop.f32.mrb[0].mxu0
    %v226 = vadd.f32 %v139, %v225
    %v227 = vpop.f32.mrb[0].mxu0
    %v228 = vadd.f32 %v143, %v227
    %229 = vdwg.mxu0
    %230 = vst [vmem:[#allocation2] sm:$0xff] %v220
    %231 = vst [vmem:[#allocation2 + $0x8] sm:$0xff] %v222
    %232 = vst [vmem:[#allocation2 + $0x10] sm:$0xff] %v226
    %233 = vst [vmem:[#allocation2 + $0x18] sm:$0xff] %v228
    // Predicated region
    $region22: #{tpu_custom_call.1} parent=1 // pred_check
      _
    $region23: #{tpu_custom_call.1} parent=1 // pred_check_branch
      %235 = sbr.rel (0) target = $region25
    $region24: #{tpu_custom_call.1} parent=1 // pred_region
      %s237 = ssub.s32 512, 512
      %238 = vsyncadd [#allocation3], %s237
      %s239 = sshll.u32 [#allocation2], 4
      %s240 = int_to_ptr.vmem [resolvable:$true] %s239
      %245 = dma.vmem_to_hbm [thread:$0]  %s240, 512, %s5, [#allocation3], 256, 256, 16
    $region25: #{tpu_custom_call.1} parent=1 // pred_fallthru
      _
    // Predicated region
    $region26: #{tpu_custom_call.1} parent=1 // pred_check
      _
    $region27: #{tpu_custom_call.1} parent=1 // pred_check_branch
      %247 = sbr.rel (0) target = $region29
    $region28: #{tpu_custom_call.1} parent=1 // pred_region
      %248 = dma.done [#allocation3], 512
    $region29: #{tpu_custom_call.1} parent=1 // pred_fallthru
      _
    %249 = vsyncpa [#allocation3], 1

</llo_original>
